<compile_context>
chip_gen: v7x
topology: tpu7x:2x2x1
jax: 0.10.0
libtpu: 0.0.40
codegen_flags: <defaults>
</compile_context>

<pallas_src>
import functools

import jax
import jax.numpy as jnp
import numpy as np
from jax.experimental import pallas as pl
from jax.experimental.pallas import tpu as pltpu


def _mbv1_kernel(*refs, th, w_out, c_in, c_out, stride, wp):
    """One (batch, row-tile) grid step.

    refs = (x_main, x_halo0[, x_halo1], dw_w, bn1_s, bn1_b, pw_w, bn2_s, bn2_b, out)
      x_main : (1, th*stride, wp, c_in)  padded rows [i*th*stride, (i+1)*th*stride)
      x_halo*: (1, 1, wp, c_in)          the (3 - stride) padded rows right below the tile
    """
    n_halo = 3 - stride
    x_main = refs[0]
    x_halo = refs[1:1 + n_halo]
    dww_ref, bn1s_ref, bn1b_ref, pww_ref, bn2s_ref, bn2b_ref, o_ref = refs[1 + n_halo:]

    # Assemble the halo'd row tile: ((th - 1) * stride + 3, wp, c_in).
    x = jnp.concatenate([x_main[0]] + [r[0] for r in x_halo], axis=0)
    x = x.astype(jnp.float32)

    row_span = (th - 1) * stride + 1

    # Depthwise 3x3: one full-padded-width partial accumulator per kj tap, so the 9-tap
    # loop only slices along the cheap leading (row) axis. The width shift / stride
    # selection happens once at the end.
    accs = [jnp.zeros((th, wp, c_in), jnp.float32) for _ in range(3)]
    for ki in range(3):
        if stride == 1:
            rows = x[ki:ki + row_span]
        else:
            rows = x[ki:ki + row_span:stride]          # leading-axis (whole-slab) stride
        for kj in range(3):
            accs[kj] = accs[kj] + rows * dww_ref[ki * 3 + kj]

    w_span = (w_out - 1) * stride + 1
    if stride == 1:
        dw = (accs[0][:, 0:w_out, :]
              + accs[1][:, 1:1 + w_out, :]
              + accs[2][:, 2:2 + w_out, :])
    else:
        # TODO(synk): fold the width stride into a phase-split layout instead of one
        # strided sublane select per tile.
        dw = (accs[0][:, 0:w_span:stride, :]
              + accs[1][:, 1:1 + w_span:stride, :]
              + accs[2][:, 2:2 + w_span:stride, :])

    # BN1 (folded) + ReLU.
    dw = dw * bn1s_ref[0] + bn1b_ref[0]
    dw = jnp.maximum(dw, 0.0)

    # Pointwise 1x1 conv == channel matmul on the MXU: bf16 x bf16 -> f32 accumulate.
    mat = dw.astype(jnp.bfloat16).reshape(th * w_out, c_in)
    out = jnp.dot(mat, pww_ref[...], preferred_element_type=jnp.float32)

    # BN2 (folded) + ReLU.
    out = out * bn2s_ref[0] + bn2b_ref[0]
    out = jnp.maximum(out, 0.0)

    o_ref[0] = out.reshape(th, w_out, c_out).astype(o_ref.dtype)


def _vmem_limit_bytes():
    """Generation-aware scoped-VMEM limit (v5e/v6e: 128 MiB physical, v7x: 64 MiB)."""
    try:
        cap = int(pltpu.get_tpu_info().vmem_capacity_bytes)
    except Exception:  # conservative fallback if the query is unavailable
        cap = 64 * 1024 * 1024
    return int(min(cap // 2, 96 * 1024 * 1024))


def _pick_row_tile(h_out, w_out, wp, c_in, c_out, stride, vmem_limit):
    """Largest row tile that divides h_out, keeps the double-buffered working set well
    inside the scoped VMEM limit, and stays <= 32 rows so the grid is deep enough to
    pipeline DMA against compute."""
    in_bytes = 2 * stride * wp * c_in * 4           # main input rows, double buffered
    out_bytes = 2 * w_out * c_out * 4               # output rows, double buffered
    tmp_bytes = 4 * wp * max(c_in, c_out) * 4       # f32 partial accumulators etc.
    per_row = in_bytes + out_bytes + tmp_bytes
    t = max(1, min(h_out, 32, (vmem_limit // 4) // per_row))
    while h_out % t:
        t -= 1
    return t


def mobilenetv1_block(x_nchw, params, stride=1, row_tile=None):
    """MobileNetV1 block forward. x_nchw: (N, C_in, H, W) f32 -> (N, C_out, H_out, W_out)."""
    assert stride in (1, 2)
    dw_w = params["dw_w"]            # (3, 3, C_in): torch dw weight[c, 0, ki, kj] == dw_w[ki, kj, c]
    bn1_scale = params["bn1_scale"]  # (C_in,)  folded BN
    bn1_bias = params["bn1_bias"]    # (C_in,)
    pw_w = params["pw_w"]            # (C_in, C_out): torch pw weight[o, i, 0, 0] == pw_w[i, o]
    bn2_scale = params["bn2_scale"]  # (C_out,)
    bn2_bias = params["bn2_bias"]    # (C_out,)

    n, c_in, h, w = x_nchw.shape
    c_out = pw_w.shape[1]
    h_out = (h - 1) // stride + 1
    w_out = (w - 1) // stride + 1

    # NCHW -> NHWC, pad H by 1 (conv padding) and W by 1 on the left / up to a multiple of
    # 8 on the right (conv padding + sublane alignment). One fused HBM rewrite.
    # TODO(synk): accept NHWC activations directly to drop the boundary transposes.
    wp = ((w + 2 + 7) // 8) * 8
    x_nhwc = jnp.transpose(x_nchw, (0, 2, 3, 1))
    x_pad = jnp.pad(x_nhwc, ((0, 0), (1, 1), (1, wp - w - 1), (0, 0)))

    vmem_limit = _vmem_limit_bytes()
    th = row_tile if row_tile is not None else _pick_row_tile(
        h_out, w_out, wp, c_in, c_out, stride, vmem_limit)
    th = max(1, min(th, h_out))
    while h_out % th:
        th -= 1
    n_row_tiles = h_out // th

    # Parameter prep (BN folded to scale/bias; pointwise weights bf16 for the MXU).
    # TODO(synk): pad C_in/C_out up to 128 for full MXU/lane utilization on wide layers.
    dw_w_flat = dw_w.reshape(9, c_in).astype(jnp.float32)
    bn1s = bn1_scale.reshape(1, c_in).astype(jnp.float32)
    bn1b = bn1_bias.reshape(1, c_in).astype(jnp.float32)
    pw_w_bf16 = pw_w.astype(jnp.bfloat16)
    bn2s = bn2_scale.reshape(1, c_out).astype(jnp.float32)
    bn2b = bn2_bias.reshape(1, c_out).astype(jnp.float32)

    kernel = functools.partial(_mbv1_kernel, th=th, w_out=w_out, c_in=c_in,
                               c_out=c_out, stride=stride, wp=wp)

    # Main row tile plus (3 - stride) single-row halo blocks of the same padded array:
    # the overlapping window is expressed with plain Blocked BlockSpecs, so all inputs
    # get the normal auto double-buffered pipeline.
    x_specs = [
        pl.BlockSpec((1, th * stride, wp, c_in), lambda b, i: (b, i, 0, 0)),
        pl.BlockSpec((1, 1, wp, c_in),
                     lambda b, i: (b, (i + 1) * th * stride, 0, 0)),
    ]
    if stride == 1:
        x_specs.append(pl.BlockSpec((1, 1, wp, c_in),
                                    lambda b, i: (b, (i + 1) * th + 1, 0, 0)))
    x_inputs = [x_pad] * len(x_specs)

    rep = lambda shape: pl.BlockSpec(shape, lambda b, i: tuple(0 for _ in shape))
    w_specs = [rep((9, c_in)), rep((1, c_in)), rep((1, c_in)),
               rep((c_in, c_out)), rep((1, c_out)), rep((1, c_out))]

    out_nhwc = pl.pallas_call(
        kernel,
        out_shape=jax.ShapeDtypeStruct((n, h_out, w_out, c_out), x_nchw.dtype),
        grid_spec=pltpu.PrefetchScalarGridSpec(
            num_scalar_prefetch=0,
            grid=(n, n_row_tiles),
            in_specs=x_specs + w_specs,
            out_specs=pl.BlockSpec((1, th, w_out, c_out), lambda b, i: (b, i, 0, 0)),
        ),
        compiler_params=pltpu.CompilerParams(
            dimension_semantics=("parallel", "parallel"),
            vmem_limit_bytes=vmem_limit,
        ),
    )(*x_inputs, dw_w_flat, bn1s, bn1b, pw_w_bf16, bn2s, bn2b)

    # TODO(synk): for c_out < 128, present the output as a lane-dense (N, H, W*C) slab to
    # avoid masked partial stores; kept (N, H, W, C) here for clarity.
    return jnp.transpose(out_nhwc, (0, 3, 1, 2))  # back to NCHW


def _reference(x_nchw, params, stride=1):
    """Pure-JAX reference (lax conv, f32) for verification."""
    dw_w = params["dw_w"]   # (3, 3, C_in)
    pw_w = params["pw_w"]   # (C_in, C_out)
    c_in = dw_w.shape[-1]

    x_nhwc = jnp.transpose(x_nchw, (0, 2, 3, 1))
    dw_hwio = dw_w.reshape(3, 3, 1, c_in)
    y = jax.lax.conv_general_dilated(
        x_nhwc, dw_hwio, window_strides=(stride, stride),
        padding=((1, 1), (1, 1)),
        dimension_numbers=("NHWC", "HWIO", "NHWC"),
        feature_group_count=c_in)
    y = y * params["bn1_scale"] + params["bn1_bias"]
    y = jnp.maximum(y, 0.0)
    y = jnp.einsum("nhwc,co->nhwo", y, pw_w)
    y = y * params["bn2_scale"] + params["bn2_bias"]
    y = jnp.maximum(y, 0.0)
    return jnp.transpose(y, (0, 3, 1, 2))


def make_params(key, c_in, c_out, eps=1e-5):
    ks = jax.random.split(key, 8)
    dw_w = jax.random.normal(ks[0], (3, 3, c_in), jnp.float32) * 0.2
    pw_w = jax.random.normal(ks[1], (c_in, c_out), jnp.float32) * 0.2

    g1 = 1.0 + 0.1 * jax.random.normal(ks[2], (c_in,), jnp.float32)
    b1 = 0.1 * jax.random.normal(ks[3], (c_in,), jnp.float32)
    m1 = 0.1 * jax.random.normal(ks[4], (c_in,), jnp.float32)
    v1 = jnp.abs(jax.random.normal(ks[5], (c_in,), jnp.float32)) + 0.5

    g2 = 1.0 + 0.1 * jax.random.normal(ks[6], (c_out,), jnp.float32)
    b2 = 0.1 * jax.random.normal(ks[7], (c_out,), jnp.float32)
    m2 = jnp.zeros((c_out,), jnp.float32)
    v2 = jnp.ones((c_out,), jnp.float32)

    s1 = g1 / jnp.sqrt(v1 + eps)
    s2 = g2 / jnp.sqrt(v2 + eps)
    return {
        "dw_w": dw_w,
        "bn1_scale": s1, "bn1_bias": b1 - m1 * s1,
        "pw_w": pw_w,
        "bn2_scale": s2, "bn2_bias": b2 - m2 * s2,
    }


if __name__ == "__main__":
    key = jax.random.PRNGKey(0)
    k_x, k_p = jax.random.split(key)

    N, C_IN, H, W = 2, 8, 16, 16
    C_OUT = 16
    STRIDE = 1

    x = jax.random.normal(k_x, (N, C_IN, H, W), jnp.float32)
    params = make_params(k_p, C_IN, C_OUT)

    ref = jax.block_until_ready(_reference(x, params, stride=STRIDE))

    # Explicit small row tile: exercises the multi-row-tile path and the cross-tile halo.
    out_tiled = jax.block_until_ready(
        mobilenetv1_block(x, params, stride=STRIDE, row_tile=4))
    # Auto (VMEM-budget driven) row tile.
    out_auto = jax.block_until_ready(
        mobilenetv1_block(x, params, stride=STRIDE))

    # bf16 pointwise matmul in the kernel vs. pure-f32 reference -> loose-ish tolerance.
    np.testing.assert_allclose(np.asarray(out_tiled), np.asarray(ref),
                               rtol=5e-2, atol=5e-2)
    np.testing.assert_allclose(np.asarray(out_auto), np.asarray(ref),
                               rtol=5e-2, atol=5e-2)

    print("KERNEL_OK")
</pallas_src>

<mosaic_0001>
module attributes {stable_mosaic.version = 11 : i64} {
  func.func @_mbv1_kernel(%arg0: i32, %arg1: i32, %arg2: memref<1x4x24x8xf32, #tpu.memory_space<vmem>>, %arg3: memref<1x1x24x8xf32, #tpu.memory_space<vmem>>, %arg4: memref<1x1x24x8xf32, #tpu.memory_space<vmem>>, %arg5: memref<9x8xf32, #tpu.memory_space<vmem>>, %arg6: memref<1x8xf32, #tpu.memory_space<vmem>>, %arg7: memref<1x8xf32, #tpu.memory_space<vmem>>, %arg8: memref<8x16xbf16, #tpu.memory_space<vmem>>, %arg9: memref<1x16xf32, #tpu.memory_space<vmem>>, %arg10: memref<1x16xf32, #tpu.memory_space<vmem>>, %arg11: memref<1x4x16x16xf32, #tpu.memory_space<vmem>>) attributes {dimension_semantics = [#tpu.dimension_semantics<parallel>, #tpu.dimension_semantics<parallel>], iteration_bounds = array<i64: 2, 4>, scalar_prefetch = 0 : i64, scratch_operands = 0 : i64, tpu.core_type = #tpu.core_type<tc>, window_params = [{transform_indices = @transform_0, window_bounds = array<i64: 1, 4, 24, 8>}, {transform_indices = @transform_1, window_bounds = array<i64: 1, 1, 24, 8>}, {transform_indices = @transform_2, window_bounds = array<i64: 1, 1, 24, 8>}, {pipeline_mode = #tpu.pipeline_mode<synchronous>, transform_indices = @transform_3, window_bounds = array<i64: 9, 8>}, {pipeline_mode = #tpu.pipeline_mode<synchronous>, transform_indices = @transform_4, window_bounds = array<i64: 1, 8>}, {pipeline_mode = #tpu.pipeline_mode<synchronous>, transform_indices = @transform_5, window_bounds = array<i64: 1, 8>}, {pipeline_mode = #tpu.pipeline_mode<synchronous>, transform_indices = @transform_6, window_bounds = array<i64: 8, 16>}, {pipeline_mode = #tpu.pipeline_mode<synchronous>, transform_indices = @transform_7, window_bounds = array<i64: 1, 16>}, {pipeline_mode = #tpu.pipeline_mode<synchronous>, transform_indices = @transform_8, window_bounds = array<i64: 1, 16>}, {transform_indices = @transform_9, window_bounds = array<i64: 1, 4, 16, 16>}]} {
    %c0 = arith.constant 0 : index
    %c0_0 = arith.constant 0 : index
    %c0_1 = arith.constant 0 : index
    %c0_2 = arith.constant 0 : index
    %0 = vector.load %arg2[%c0, %c0_0, %c0_1, %c0_2] : memref<1x4x24x8xf32, #tpu.memory_space<vmem>>, vector<1x4x24x8xf32>
    %1 = vector.shape_cast %0 : vector<1x4x24x8xf32> to vector<4x24x8xf32>
    %c0_3 = arith.constant 0 : index
    %c0_4 = arith.constant 0 : index
    %c0_5 = arith.constant 0 : index
    %c0_6 = arith.constant 0 : index
    %2 = vector.load %arg3[%c0_3, %c0_4, %c0_5, %c0_6] : memref<1x1x24x8xf32, #tpu.memory_space<vmem>>, vector<1x1x24x8xf32>
    %3 = vector.shape_cast %2 : vector<1x1x24x8xf32> to vector<1x24x8xf32>
    %c0_7 = arith.constant 0 : index
    %c0_8 = arith.constant 0 : index
    %c0_9 = arith.constant 0 : index
    %c0_10 = arith.constant 0 : index
    %4 = vector.load %arg4[%c0_7, %c0_8, %c0_9, %c0_10] : memref<1x1x24x8xf32, #tpu.memory_space<vmem>>, vector<1x1x24x8xf32>
    %5 = vector.shape_cast %4 : vector<1x1x24x8xf32> to vector<1x24x8xf32>
    %6 = tpu.concatenate %1, %3, %5 in 0 : vector<4x24x8xf32>, vector<1x24x8xf32>, vector<1x24x8xf32> -> vector<6x24x8xf32>
    %cst = arith.constant 0.000000e+00 : f32
    %7 = vector.broadcast %cst : f32 to vector<4x24x8xf32>
    %cst_11 = arith.constant 0.000000e+00 : f32
    %8 = vector.broadcast %cst_11 : f32 to vector<4x24x8xf32>
    %cst_12 = arith.constant 0.000000e+00 : f32
    %9 = vector.broadcast %cst_12 : f32 to vector<4x24x8xf32>
    %10 = vector.extract_strided_slice %6 {offsets = [0, 0, 0], sizes = [4, 24, 8], strides = [1, 1, 1]} : vector<6x24x8xf32> to vector<4x24x8xf32>
    %c0_13 = arith.constant 0 : index
    %c0_14 = arith.constant 0 : index
    %11 = vector.load %arg5[%c0_13, %c0_14] : memref<9x8xf32, #tpu.memory_space<vmem>>, vector<1x8xf32>
    %12 = vector.shape_cast %11 : vector<1x8xf32> to vector<8xf32>
    %13 = vector.shape_cast %12 : vector<8xf32> to vector<1x1x8xf32>
    %14 = vector.broadcast %13 : vector<1x1x8xf32> to vector<4x24x8xf32>
    %15 = arith.mulf %10, %14 : vector<4x24x8xf32>
    %16 = arith.addf %7, %15 : vector<4x24x8xf32>
    %c1 = arith.constant 1 : index
    %c0_15 = arith.constant 0 : index
    %17 = vector.load %arg5[%c1, %c0_15] : memref<9x8xf32, #tpu.memory_space<vmem>>, vector<1x8xf32>
    %18 = vector.shape_cast %17 : vector<1x8xf32> to vector<8xf32>
    %19 = vector.shape_cast %18 : vector<8xf32> to vector<1x1x8xf32>
    %20 = vector.broadcast %19 : vector<1x1x8xf32> to vector<4x24x8xf32>
    %21 = arith.mulf %10, %20 : vector<4x24x8xf32>
    %22 = arith.addf %8, %21 : vector<4x24x8xf32>
    %c2 = arith.constant 2 : index
    %c0_16 = arith.constant 0 : index
    %23 = vector.load %arg5[%c2, %c0_16] : memref<9x8xf32, #tpu.memory_space<vmem>>, vector<1x8xf32>
    %24 = vector.shape_cast %23 : vector<1x8xf32> to vector<8xf32>
    %25 = vector.shape_cast %24 : vector<8xf32> to vector<1x1x8xf32>
    %26 = vector.broadcast %25 : vector<1x1x8xf32> to vector<4x24x8xf32>
    %27 = arith.mulf %10, %26 : vector<4x24x8xf32>
    %28 = arith.addf %9, %27 : vector<4x24x8xf32>
    %29 = vector.extract_strided_slice %6 {offsets = [1, 0, 0], sizes = [4, 24, 8], strides = [1, 1, 1]} : vector<6x24x8xf32> to vector<4x24x8xf32>
    %c3 = arith.constant 3 : index
    %c0_17 = arith.constant 0 : index
    %30 = vector.load %arg5[%c3, %c0_17] : memref<9x8xf32, #tpu.memory_space<vmem>>, vector<1x8xf32>
    %31 = vector.shape_cast %30 : vector<1x8xf32> to vector<8xf32>
    %32 = vector.shape_cast %31 : vector<8xf32> to vector<1x1x8xf32>
    %33 = vector.broadcast %32 : vector<1x1x8xf32> to vector<4x24x8xf32>
    %34 = arith.mulf %29, %33 : vector<4x24x8xf32>
    %35 = arith.addf %16, %34 : vector<4x24x8xf32>
    %c4 = arith.constant 4 : index
    %c0_18 = arith.constant 0 : index
    %36 = vector.load %arg5[%c4, %c0_18] : memref<9x8xf32, #tpu.memory_space<vmem>>, vector<1x8xf32>
    %37 = vector.shape_cast %36 : vector<1x8xf32> to vector<8xf32>
    %38 = vector.shape_cast %37 : vector<8xf32> to vector<1x1x8xf32>
    %39 = vector.broadcast %38 : vector<1x1x8xf32> to vector<4x24x8xf32>
    %40 = arith.mulf %29, %39 : vector<4x24x8xf32>
    %41 = arith.addf %22, %40 : vector<4x24x8xf32>
    %c5 = arith.constant 5 : index
    %c0_19 = arith.constant 0 : index
    %42 = vector.load %arg5[%c5, %c0_19] : memref<9x8xf32, #tpu.memory_space<vmem>>, vector<1x8xf32>
    %43 = vector.shape_cast %42 : vector<1x8xf32> to vector<8xf32>
    %44 = vector.shape_cast %43 : vector<8xf32> to vector<1x1x8xf32>
    %45 = vector.broadcast %44 : vector<1x1x8xf32> to vector<4x24x8xf32>
    %46 = arith.mulf %29, %45 : vector<4x24x8xf32>
    %47 = arith.addf %28, %46 : vector<4x24x8xf32>
    %48 = vector.extract_strided_slice %6 {offsets = [2, 0, 0], sizes = [4, 24, 8], strides = [1, 1, 1]} : vector<6x24x8xf32> to vector<4x24x8xf32>
    %c6 = arith.constant 6 : index
    %c0_20 = arith.constant 0 : index
    %49 = vector.load %arg5[%c6, %c0_20] : memref<9x8xf32, #tpu.memory_space<vmem>>, vector<1x8xf32>
    %50 = vector.shape_cast %49 : vector<1x8xf32> to vector<8xf32>
    %51 = vector.shape_cast %50 : vector<8xf32> to vector<1x1x8xf32>
    %52 = vector.broadcast %51 : vector<1x1x8xf32> to vector<4x24x8xf32>
    %53 = arith.mulf %48, %52 : vector<4x24x8xf32>
    %54 = arith.addf %35, %53 : vector<4x24x8xf32>
    %c7 = arith.constant 7 : index
    %c0_21 = arith.constant 0 : index
    %55 = vector.load %arg5[%c7, %c0_21] : memref<9x8xf32, #tpu.memory_space<vmem>>, vector<1x8xf32>
    %56 = vector.shape_cast %55 : vector<1x8xf32> to vector<8xf32>
    %57 = vector.shape_cast %56 : vector<8xf32> to vector<1x1x8xf32>
    %58 = vector.broadcast %57 : vector<1x1x8xf32> to vector<4x24x8xf32>
    %59 = arith.mulf %48, %58 : vector<4x24x8xf32>
    %60 = arith.addf %41, %59 : vector<4x24x8xf32>
    %c8 = arith.constant 8 : index
    %c0_22 = arith.constant 0 : index
    %61 = vector.load %arg5[%c8, %c0_22] : memref<9x8xf32, #tpu.memory_space<vmem>>, vector<1x8xf32>
    %62 = vector.shape_cast %61 : vector<1x8xf32> to vector<8xf32>
    %63 = vector.shape_cast %62 : vector<8xf32> to vector<1x1x8xf32>
    %64 = vector.broadcast %63 : vector<1x1x8xf32> to vector<4x24x8xf32>
    %65 = arith.mulf %48, %64 : vector<4x24x8xf32>
    %66 = arith.addf %47, %65 : vector<4x24x8xf32>
    %67 = vector.extract_strided_slice %54 {offsets = [0, 0, 0], sizes = [4, 16, 8], strides = [1, 1, 1]} : vector<4x24x8xf32> to vector<4x16x8xf32>
    %68 = vector.extract_strided_slice %60 {offsets = [0, 1, 0], sizes = [4, 16, 8], strides = [1, 1, 1]} : vector<4x24x8xf32> to vector<4x16x8xf32>
    %69 = arith.addf %67, %68 : vector<4x16x8xf32>
    %70 = vector.extract_strided_slice %66 {offsets = [0, 2, 0], sizes = [4, 16, 8], strides = [1, 1, 1]} : vector<4x24x8xf32> to vector<4x16x8xf32>
    %71 = arith.addf %69, %70 : vector<4x16x8xf32>
    %c0_23 = arith.constant 0 : index
    %c0_24 = arith.constant 0 : index
    %72 = vector.load %arg6[%c0_23, %c0_24] : memref<1x8xf32, #tpu.memory_space<vmem>>, vector<1x8xf32>
    %73 = vector.shape_cast %72 : vector<1x8xf32> to vector<8xf32>
    %74 = vector.shape_cast %73 : vector<8xf32> to vector<1x1x8xf32>
    %75 = vector.broadcast %74 : vector<1x1x8xf32> to vector<4x16x8xf32>
    %76 = arith.mulf %71, %75 : vector<4x16x8xf32>
    %c0_25 = arith.constant 0 : index
    %c0_26 = arith.constant 0 : index
    %77 = vector.load %arg7[%c0_25, %c0_26] : memref<1x8xf32, #tpu.memory_space<vmem>>, vector<1x8xf32>
    %78 = vector.shape_cast %77 : vector<1x8xf32> to vector<8xf32>
    %79 = vector.shape_cast %78 : vector<8xf32> to vector<1x1x8xf32>
    %80 = vector.broadcast %79 : vector<1x1x8xf32> to vector<4x16x8xf32>
    %81 = arith.addf %76, %80 : vector<4x16x8xf32>
    %cst_27 = arith.constant 0.000000e+00 : f32
    %82 = vector.broadcast %cst_27 : f32 to vector<4x16x8xf32>
    %83 = arith.maximumf %81, %82 : vector<4x16x8xf32>
    %84 = arith.truncf %83 : vector<4x16x8xf32> to vector<4x16x8xbf16>
    %85 = vector.shape_cast %84 : vector<4x16x8xbf16> to vector<64x8xbf16>
    %c0_28 = arith.constant 0 : index
    %c0_29 = arith.constant 0 : index
    %86 = vector.load %arg8[%c0_28, %c0_29] : memref<8x16xbf16, #tpu.memory_space<vmem>>, vector<8x16xbf16>
    %cst_30 = arith.constant dense<0.000000e+00> : vector<64x16xf32>
    %87 = tpu.matmul %85, %86, %cst_30 {dimension_numbers = #tpu.dot_dimension_numbers<[1], [0], [0], [1], [0, 0, 1, 1], [], []>} : vector<64x8xbf16>, vector<8x16xbf16>, vector<64x16xf32> -> vector<64x16xf32>
    %c0_31 = arith.constant 0 : index
    %c0_32 = arith.constant 0 : index
    %88 = vector.load %arg9[%c0_31, %c0_32] : memref<1x16xf32, #tpu.memory_space<vmem>>, vector<1x16xf32>
    %89 = vector.shape_cast %88 : vector<1x16xf32> to vector<16xf32>
    %90 = vector.shape_cast %89 : vector<16xf32> to vector<1x16xf32>
    %91 = vector.broadcast %90 : vector<1x16xf32> to vector<64x16xf32>
    %92 = arith.mulf %87, %91 : vector<64x16xf32>
    %c0_33 = arith.constant 0 : index
    %c0_34 = arith.constant 0 : index
    %93 = vector.load %arg10[%c0_33, %c0_34] : memref<1x16xf32, #tpu.memory_space<vmem>>, vector<1x16xf32>
    %94 = vector.shape_cast %93 : vector<1x16xf32> to vector<16xf32>
    %95 = vector.shape_cast %94 : vector<16xf32> to vector<1x16xf32>
    %96 = vector.broadcast %95 : vector<1x16xf32> to vector<64x16xf32>
    %97 = arith.addf %92, %96 : vector<64x16xf32>
    %cst_35 = arith.constant 0.000000e+00 : f32
    %98 = vector.broadcast %cst_35 : f32 to vector<64x16xf32>
    %99 = arith.maximumf %97, %98 : vector<64x16xf32>
    %100 = vector.shape_cast %99 : vector<64x16xf32> to vector<4x16x16xf32>
    %c0_36 = arith.constant 0 : index
    %c0_37 = arith.constant 0 : index
    %c0_38 = arith.constant 0 : index
    %c0_39 = arith.constant 0 : index
    %101 = vector.load %arg11[%c0_36, %c0_37, %c0_38, %c0_39] : memref<1x4x16x16xf32, #tpu.memory_space<vmem>>, vector<1x4x16x16xf32>
    %102 = vector.shape_cast %101 : vector<1x4x16x16xf32> to vector<4x16x16xf32>
    %103 = vector.shape_cast %100 : vector<4x16x16xf32> to vector<1x4x16x16xf32>
    tpu.vector_store %arg11[%c0_36, %c0_37, %c0_38, %c0_39], %103 {strides = array<i32>} : memref<1x4x16x16xf32, #tpu.memory_space<vmem>>, vector<1x4x16x16xf32>,
    return
  }
  func.func @transform_0(%arg0: i32, %arg1: i32) -> (i32, i32, i32, i32) {
    %c0_i32 = arith.constant 0 : i32
    %c0_i32_0 = arith.constant 0 : i32
    %c0_i32_1 = arith.constant 0 : i32
    return %arg0, %arg1, %c0_i32, %c0_i32_0 : i32, i32, i32, i32
  }
  func.func @transform_1(%arg0: i32, %arg1: i32) -> (i32, i32, i32, i32) {
    %c1_i32 = arith.constant 1 : i32
    %0 = arith.addi %arg1, %c1_i32 : i32
    %c4_i32 = arith.constant 4 : i32
    %1 = arith.muli %0, %c4_i32 : i32
    %c1_i32_0 = arith.constant 1 : i32
    %2 = arith.muli %1, %c1_i32_0 : i32
    %c0_i32 = arith.constant 0 : i32
    %c0_i32_1 = arith.constant 0 : i32
    %c0_i32_2 = arith.constant 0 : i32
    return %arg0, %2, %c0_i32, %c0_i32_1 : i32, i32, i32, i32
  }
  func.func @transform_2(%arg0: i32, %arg1: i32) -> (i32, i32, i32, i32) {
    %c1_i32 = arith.constant 1 : i32
    %0 = arith.addi %arg1, %c1_i32 : i32
    %c4_i32 = arith.constant 4 : i32
    %1 = arith.muli %0, %c4_i32 : i32
    %c1_i32_0 = arith.constant 1 : i32
    %2 = arith.addi %1, %c1_i32_0 : i32
    %c0_i32 = arith.constant 0 : i32
    %c0_i32_1 = arith.constant 0 : i32
    %c0_i32_2 = arith.constant 0 : i32
    return %arg0, %2, %c0_i32, %c0_i32_1 : i32, i32, i32, i32
  }
  func.func @transform_3(%arg0: i32, %arg1: i32) -> (i32, i32) {
    %c0_i32 = arith.constant 0 : i32
    %c0_i32_0 = arith.constant 0 : i32
    %c0_i32_1 = arith.constant 0 : i32
    return %c0_i32, %c0_i32_0 : i32, i32
  }
  func.func @transform_4(%arg0: i32, %arg1: i32) -> (i32, i32) {
    %c0_i32 = arith.constant 0 : i32
    %c0_i32_0 = arith.constant 0 : i32
    %c0_i32_1 = arith.constant 0 : i32
    return %c0_i32, %c0_i32_0 : i32, i32
  }
  func.func @transform_5(%arg0: i32, %arg1: i32) -> (i32, i32) {
    %c0_i32 = arith.constant 0 : i32
    %c0_i32_0 = arith.constant 0 : i32
    %c0_i32_1 = arith.constant 0 : i32
    return %c0_i32, %c0_i32_0 : i32, i32
  }
  func.func @transform_6(%arg0: i32, %arg1: i32) -> (i32, i32) {
    %c0_i32 = arith.constant 0 : i32
    %c0_i32_0 = arith.constant 0 : i32
    %c0_i32_1 = arith.constant 0 : i32
    return %c0_i32, %c0_i32_0 : i32, i32
  }
  func.func @transform_7(%arg0: i32, %arg1: i32) -> (i32, i32) {
    %c0_i32 = arith.constant 0 : i32
    %c0_i32_0 = arith.constant 0 : i32
    %c0_i32_1 = arith.constant 0 : i32
    return %c0_i32, %c0_i32_0 : i32, i32
  }
  func.func @transform_8(%arg0: i32, %arg1: i32) -> (i32, i32) {
    %c0_i32 = arith.constant 0 : i32
    %c0_i32_0 = arith.constant 0 : i32
    %c0_i32_1 = arith.constant 0 : i32
    return %c0_i32, %c0_i32_0 : i32, i32
  }
  func.func @transform_9(%arg0: i32, %arg1: i32) -> (i32, i32, i32, i32) {
    %c0_i32 = arith.constant 0 : i32
    %c0_i32_0 = arith.constant 0 : i32
    %c0_i32_1 = arith.constant 0 : i32
    return %arg0, %arg1, %c0_i32, %c0_i32_0 : i32, i32, i32, i32
  }
}

</mosaic_0001>

<llo_original>
// kernel: tpu_custom_call.1
$region0: #{tpu_custom_call.1}
  #allocation0 [shape = 'u32[]', space=smem, size = 0x4, offset = 0x4, fixed_abs, tag = 'smem constant byte address 0x4 - core index']
  #allocation1 [shape = 'u32[144,128]{1,0:T(1,128)}', space=vmem, size = 0x12000, scoped, tag = 'internal scratch']
  %s0 = inlined_call_operand.vmem [shape: f32[2,18,24,8], index: 0, kind: input, shape index: {}]
  %s1 = inlined_call_operand.vmem [shape: f32[2,18,24,8], index: 1, kind: input, shape index: {}]
  %s2 = inlined_call_operand.vmem [shape: f32[2,18,24,8], index: 2, kind: input, shape index: {}]
  %s3 = inlined_call_operand.vmem [shape: f32[9,8], index: 3, kind: input, shape index: {}]
  %s4 = inlined_call_operand.vmem [shape: f32[1,8], index: 4, kind: input, shape index: {}]
  %s5 = inlined_call_operand.vmem [shape: f32[1,8], index: 5, kind: input, shape index: {}]
  %s6 = inlined_call_operand.vmem [shape: bf16[8,16], index: 6, kind: input, shape index: {}]
  %s7 = inlined_call_operand.vmem [shape: f32[1,16], index: 7, kind: input, shape index: {}]
  %s8 = inlined_call_operand.vmem [shape: f32[1,16], index: 8, kind: input, shape index: {}]
  %s9 = inlined_call_operand.hbm [shape: f32[2,16,16,16], index: 9, kind: output, shape index: {}]
  %s10 = sld [smem:[#allocation0]]
  $region69: #{tpu_custom_call.1} parent=0
    _
  %s12 = ssub.s32 1, %s10
  %s13 = scalar_select 0, %s12, %s10
  $region1: #{tpu_custom_call.1} parent=0
    #allocation2 [shape = 'u8[65536]{0}', space=vmem, size = 0x10000, scoped, tag = 'output window, operand 0']
    #allocation3 [shape = 's32[2]{0}', space=sflag, size = 0x8, scoped, tag = 'scoped memory for tpu_custom_call.1']
    %14 = vsyncpa [#allocation3], 0
    %s15 = scalar_lea.sflag [#allocation3], 1
    %16 = vsyncpa %s15, 0
    loop: start=0, step=1, limit=10
    $region2: #{tpu_custom_call.1} parent=1 // loop_pre_header
      _
    $region3: #{tpu_custom_call.1} parent=1 // loop_header
      %s18 = sphi 0, %s22
      %p19 = scmp.ge.s32.totalorder %s18, 10
      %s25 = sphi 0, %s37
      %s26 = sphi 0, %s33
      %s27 = sphi 0, %s25
      %s28 = sphi 0, %s26
      %s29 = sphi 0, %s27
      %s30 = sphi 0, %s28
      %s42 = sphi 0, %s44
      %s45 = sphi 0, %s42
      %s46 = sphi 0, %s45
      %s62 = sphi 0, %s46
      %s74 = sphi 0, %s76
      %s77 = sphi 0, %s74
      %s78 = sphi 0, %s77
      %s94 = sphi 0, %s78
      %s108 = sphi 0, %s110
      %s111 = sphi 0, %s108
      %s112 = sphi 0, %s111
      %s128 = sphi 0, %s112
      %s132 = sphi 0, %s132
      %s134 = sphi 0, %s132
      %s135 = sphi 0, %s134
      %s149 = sphi 0, %s135
      %s153 = sphi 0, %s153
      %s155 = sphi 0, %s153
      %s156 = sphi 0, %s155
      %s170 = sphi 0, %s156
      %s174 = sphi 0, %s174
      %s176 = sphi 0, %s174
      %s177 = sphi 0, %s176
      %s191 = sphi 0, %s177
      %s195 = sphi 0, %s195
      %s197 = sphi 0, %s195
      %s198 = sphi 0, %s197
      %s212 = sphi 0, %s198
      %s216 = sphi 0, %s216
      %s218 = sphi 0, %s216
      %s219 = sphi 0, %s218
      %s233 = sphi 0, %s219
      %s237 = sphi 0, %s237
      %s239 = sphi 0, %s237
      %s240 = sphi 0, %s239
      %s254 = sphi 0, %s240
      %s262 = sphi 0, %s264
      %s265 = sphi 0, %s262
      %s266 = sphi 0, %s265
      %s282 = sphi 0, %s266
    $region4: #{tpu_custom_call.1} parent=1 // loop_header_branch
      %21 = sbr.rel (%p19) target = $region8
    $region5: #{tpu_custom_call.1} parent=1 // loop_body
      %s23 = ssub.s32 %s18, 1
      %s24 = ssub.s32 %s18, 2
      %s31 = sadd.s32 1, %s26
      %p32 = scmp.ge.s32.totalorder %s31, 4
      %s33 = scalar_select %p32, 0, %s31
      %s34 = sadd.s32 1, %s25
      %s35 = scalar_select %p32, %s34, %s25
      %p36 = scmp.ge.s32.totalorder %s35, 2
      %s37 = scalar_select %p36, 0, %s35
      %s38 = ssub.s32 %s25, %s37
      %s39 = ssub.s32 %s26, %s33
      %s40 = sor.u32 %s38, %s39
      %p41 = scmp.eq.s32.totalorder %s40, 0
      %s43 = sadd.s32 %s42, 1
      %s44 = scalar_select %p41, %s42, %s43
      %p47 = pneg %p41
      %p48 = scmp.eq.s32.totalorder %s18, 7
      %p49 = por %p47, %p48
      %p50 = scmp.ne.s32.totalorder %s42, %s45
      %p51 = scmp.eq.s32.totalorder %s18, 0
      %p52 = por %p50, %p51
      %p53 = scmp.ne.s32.totalorder %s42, %s45
      %p54 = scmp.eq.s32.totalorder %s23, 7
      %p55 = por %p53, %p54
      %p56 = scmp.ne.s32.totalorder %s45, %s46
      %p57 = scmp.eq.s32.totalorder %s23, 0
      %p58 = por %p56, %p57
      %p59 = scmp.ne.s32.totalorder %s45, %s46
      %p60 = scmp.eq.s32.totalorder %s24, 7
      %p61 = por %p59, %p60
      %p63 = scmp.ne.s32.totalorder %s46, %s62
      %p64 = scmp.eq.s32.totalorder %s24, 0
      %p65 = por %p63, %p64
      %s66 = sadd.s32 %s26, 1
      %s67 = smul.u32 %s66, 4
      %s68 = sadd.s32 %s33, 1
      %s69 = smul.u32 %s68, 4
      %s70 = ssub.s32 %s25, %s37
      %s71 = ssub.s32 %s67, %s69
      %s72 = sor.u32 %s70, %s71
      %p73 = scmp.eq.s32.totalorder %s72, 0
      %s75 = sadd.s32 %s74, 1
      %s76 = scalar_select %p73, %s74, %s75
      %p79 = pneg %p73
      %p80 = scmp.eq.s32.totalorder %s18, 7
      %p81 = por %p79, %p80
      %p82 = scmp.ne.s32.totalorder %s74, %s77
      %p83 = scmp.eq.s32.totalorder %s18, 0
      %p84 = por %p82, %p83
      %p85 = scmp.ne.s32.totalorder %s74, %s77
      %p86 = scmp.eq.s32.totalorder %s23, 7
      %p87 = por %p85, %p86
      %p88 = scmp.ne.s32.totalorder %s77, %s78
      %p89 = scmp.eq.s32.totalorder %s23, 0
      %p90 = por %p88, %p89
      %p91 = scmp.ne.s32.totalorder %s77, %s78
      %p92 = scmp.eq.s32.totalorder %s24, 7
      %p93 = por %p91, %p92
      %p95 = scmp.ne.s32.totalorder %s78, %s94
      %p96 = scmp.eq.s32.totalorder %s24, 0
      %p97 = por %p95, %p96
      %s98 = sadd.s32 %s26, 1
      %s99 = smul.u32 %s98, 4
      %s100 = sadd.s32 %s99, 1
      %s101 = sadd.s32 %s33, 1
      %s102 = smul.u32 %s101, 4
      %s103 = sadd.s32 %s102, 1
      %s104 = ssub.s32 %s25, %s37
      %s105 = ssub.s32 %s100, %s103
      %s106 = sor.u32 %s104, %s105
      %p107 = scmp.eq.s32.totalorder %s106, 0
      %s109 = sadd.s32 %s108, 1
      %s110 = scalar_select %p107, %s108, %s109
      %p113 = pneg %p107
      %p114 = scmp.eq.s32.totalorder %s18, 7
      %p115 = por %p113, %p114
      %p116 = scmp.ne.s32.totalorder %s108, %s111
      %p117 = scmp.eq.s32.totalorder %s18, 0
      %p118 = por %p116, %p117
      %p119 = scmp.ne.s32.totalorder %s108, %s111
      %p120 = scmp.eq.s32.totalorder %s23, 7
      %p121 = por %p119, %p120
      %p122 = scmp.ne.s32.totalorder %s111, %s112
      %p123 = scmp.eq.s32.totalorder %s23, 0
      %p124 = por %p122, %p123
      %p125 = scmp.ne.s32.totalorder %s111, %s112
      %p126 = scmp.eq.s32.totalorder %s24, 7
      %p127 = por %p125, %p126
      %p129 = scmp.ne.s32.totalorder %s112, %s128
      %p130 = scmp.eq.s32.totalorder %s24, 0
      %p131 = por %p129, %p130
      %s133 = sadd.s32 %s132, 1
      %p136 = scmp.eq.s32.totalorder %s18, 7
      %p137 = scmp.ne.s32.totalorder %s132, %s134
      %p138 = scmp.eq.s32.totalorder %s18, 0
      %p139 = por %p137, %p138
      %p140 = scmp.ne.s32.totalorder %s132, %s134
      %p141 = scmp.eq.s32.totalorder %s23, 7
      %p142 = por %p140, %p141
      %p143 = scmp.ne.s32.totalorder %s134, %s135
      %p144 = scmp.eq.s32.totalorder %s23, 0
      %p145 = por %p143, %p144
      %p146 = scmp.ne.s32.totalorder %s134, %s135
      %p147 = scmp.eq.s32.totalorder %s24, 7
      %p148 = por %p146, %p147
      %p150 = scmp.ne.s32.totalorder %s135, %s149
      %p151 = scmp.eq.s32.totalorder %s24, 0
      %p152 = por %p150, %p151
      %s154 = sadd.s32 %s153, 1
      %p157 = scmp.eq.s32.totalorder %s18, 7
      %p158 = scmp.ne.s32.totalorder %s153, %s155
      %p159 = scmp.eq.s32.totalorder %s18, 0
      %p160 = por %p158, %p159
      %p161 = scmp.ne.s32.totalorder %s153, %s155
      %p162 = scmp.eq.s32.totalorder %s23, 7
      %p163 = por %p161, %p162
      %p164 = scmp.ne.s32.totalorder %s155, %s156
      %p165 = scmp.eq.s32.totalorder %s23, 0
      %p166 = por %p164, %p165
      %p167 = scmp.ne.s32.totalorder %s155, %s156
      %p168 = scmp.eq.s32.totalorder %s24, 7
      %p169 = por %p167, %p168
      %p171 = scmp.ne.s32.totalorder %s156, %s170
      %p172 = scmp.eq.s32.totalorder %s24, 0
      %p173 = por %p171, %p172
      %s175 = sadd.s32 %s174, 1
      %p178 = scmp.eq.s32.totalorder %s18, 7
      %p179 = scmp.ne.s32.totalorder %s174, %s176
      %p180 = scmp.eq.s32.totalorder %s18, 0
      %p181 = por %p179, %p180
      %p182 = scmp.ne.s32.totalorder %s174, %s176
      %p183 = scmp.eq.s32.totalorder %s23, 7
      %p184 = por %p182, %p183
      %p185 = scmp.ne.s32.totalorder %s176, %s177
      %p186 = scmp.eq.s32.totalorder %s23, 0
      %p187 = por %p185, %p186
      %p188 = scmp.ne.s32.totalorder %s176, %s177
      %p189 = scmp.eq.s32.totalorder %s24, 7
      %p190 = por %p188, %p189
      %p192 = scmp.ne.s32.totalorder %s177, %s191
      %p193 = scmp.eq.s32.totalorder %s24, 0
      %p194 = por %p192, %p193
      %s196 = sadd.s32 %s195, 1
      %p199 = scmp.eq.s32.totalorder %s18, 7
      %p200 = scmp.ne.s32.totalorder %s195, %s197
      %p201 = scmp.eq.s32.totalorder %s18, 0
      %p202 = por %p200, %p201
      %p203 = scmp.ne.s32.totalorder %s195, %s197
      %p204 = scmp.eq.s32.totalorder %s23, 7
      %p205 = por %p203, %p204
      %p206 = scmp.ne.s32.totalorder %s197, %s198
      %p207 = scmp.eq.s32.totalorder %s23, 0
      %p208 = por %p206, %p207
      %p209 = scmp.ne.s32.totalorder %s197, %s198
      %p210 = scmp.eq.s32.totalorder %s24, 7
      %p211 = por %p209, %p210
      %p213 = scmp.ne.s32.totalorder %s198, %s212
      %p214 = scmp.eq.s32.totalorder %s24, 0
      %p215 = por %p213, %p214
      %s217 = sadd.s32 %s216, 1
      %p220 = scmp.eq.s32.totalorder %s18, 7
      %p221 = scmp.ne.s32.totalorder %s216, %s218
      %p222 = scmp.eq.s32.totalorder %s18, 0
      %p223 = por %p221, %p222
      %p224 = scmp.ne.s32.totalorder %s216, %s218
      %p225 = scmp.eq.s32.totalorder %s23, 7
      %p226 = por %p224, %p225
      %p227 = scmp.ne.s32.totalorder %s218, %s219
      %p228 = scmp.eq.s32.totalorder %s23, 0
      %p229 = por %p227, %p228
      %p230 = scmp.ne.s32.totalorder %s218, %s219
      %p231 = scmp.eq.s32.totalorder %s24, 7
      %p232 = por %p230, %p231
      %p234 = scmp.ne.s32.totalorder %s219, %s233
      %p235 = scmp.eq.s32.totalorder %s24, 0
      %p236 = por %p234, %p235
      %s238 = sadd.s32 %s237, 1
      %p241 = scmp.eq.s32.totalorder %s18, 7
      %p242 = scmp.ne.s32.totalorder %s237, %s239
      %p243 = scmp.eq.s32.totalorder %s18, 0
      %p244 = por %p242, %p243
      %p245 = scmp.ne.s32.totalorder %s237, %s239
      %p246 = scmp.eq.s32.totalorder %s23, 7
      %p247 = por %p245, %p246
      %p248 = scmp.ne.s32.totalorder %s239, %s240
      %p249 = scmp.eq.s32.totalorder %s23, 0
      %p250 = por %p248, %p249
      %p251 = scmp.ne.s32.totalorder %s239, %s240
      %p252 = scmp.eq.s32.totalorder %s24, 7
      %p253 = por %p251, %p252
      %p255 = scmp.ne.s32.totalorder %s240, %s254
      %p256 = scmp.eq.s32.totalorder %s24, 0
      %p257 = por %p255, %p256
      %s258 = ssub.s32 %s25, %s37
      %s259 = ssub.s32 %s26, %s33
      %s260 = sor.u32 %s258, %s259
      %p261 = scmp.eq.s32.totalorder %s260, 0
      %s263 = sadd.s32 %s262, 1
      %s264 = scalar_select %p261, %s262, %s263
      %p267 = pneg %p261
      %p268 = scmp.eq.s32.totalorder %s18, 7
      %p269 = por %p267, %p268
      %p270 = scmp.ne.s32.totalorder %s262, %s265
      %p271 = scmp.eq.s32.totalorder %s18, 0
      %p272 = por %p270, %p271
      %p273 = scmp.ne.s32.totalorder %s262, %s265
      %p274 = scmp.eq.s32.totalorder %s23, 7
      %p275 = por %p273, %p274
      %p276 = scmp.ne.s32.totalorder %s265, %s266
      %p277 = scmp.eq.s32.totalorder %s23, 0
      %p278 = por %p276, %p277
      %p279 = scmp.ne.s32.totalorder %s265, %s266
      %p280 = scmp.eq.s32.totalorder %s24, 7
      %p281 = por %p279, %p280
      %p283 = scmp.ne.s32.totalorder %s266, %s282
      %p284 = scmp.eq.s32.totalorder %s24, 0
      %p285 = por %p283, %p284
      %p286 = scmp.le.s32.totalorder 1, %s18
      %p287 = scmp.lt.s32.totalorder %s18, 9
      %p288 = pnand %p286, %p287
      %p289 = pneg %p288
      // Predicated region
      $region9: #{tpu_custom_call.1} parent=5 // pred_check
        _
      $region10: #{tpu_custom_call.1} parent=5 // pred_check_branch
        %291 = sbr.rel (%p288) target = $region12
      $region11: #{tpu_custom_call.1} parent=5 // pred_region
        %s292 = ssub.s32 %s18, 1
        // Predicated region
        $region13: #{tpu_custom_call.1} parent=11 // pred_check
          %p293 = pneg %p145
        $region14: #{tpu_custom_call.1} parent=11 // pred_check_branch
          %295 = sbr.rel (%p293) target = $region16
        $region15: #{tpu_custom_call.1} parent=11 // pred_region
          _
        $region16: #{tpu_custom_call.1} parent=11 // pred_fallthru
          _
        // Predicated region
        $region17: #{tpu_custom_call.1} parent=11 // pred_check
          %p296 = pneg %p166
        $region18: #{tpu_custom_call.1} parent=11 // pred_check_branch
          %298 = sbr.rel (%p296) target = $region20
        $region19: #{tpu_custom_call.1} parent=11 // pred_region
          _
        $region20: #{tpu_custom_call.1} parent=11 // pred_fallthru
          _
        // Predicated region
        $region21: #{tpu_custom_call.1} parent=11 // pred_check
          %p299 = pneg %p187
        $region22: #{tpu_custom_call.1} parent=11 // pred_check_branch
          %301 = sbr.rel (%p299) target = $region24
        $region23: #{tpu_custom_call.1} parent=11 // pred_region
          _
        $region24: #{tpu_custom_call.1} parent=11 // pred_fallthru
          _
        // Predicated region
        $region25: #{tpu_custom_call.1} parent=11 // pred_check
          %p302 = pneg %p208
        $region26: #{tpu_custom_call.1} parent=11 // pred_check_branch
          %304 = sbr.rel (%p302) target = $region28
        $region27: #{tpu_custom_call.1} parent=11 // pred_region
          _
        $region28: #{tpu_custom_call.1} parent=11 // pred_fallthru
          _
        // Predicated region
        $region29: #{tpu_custom_call.1} parent=11 // pred_check
          %p305 = pneg %p229
        $region30: #{tpu_custom_call.1} parent=11 // pred_check_branch
          %307 = sbr.rel (%p305) target = $region32
        $region31: #{tpu_custom_call.1} parent=11 // pred_region
          _
        $region32: #{tpu_custom_call.1} parent=11 // pred_fallthru
          _
        // Predicated region
        $region33: #{tpu_custom_call.1} parent=11 // pred_check
          %p308 = pneg %p250
        $region34: #{tpu_custom_call.1} parent=11 // pred_check_branch
          %310 = sbr.rel (%p308) target = $region36
        $region35: #{tpu_custom_call.1} parent=11 // pred_region
          _
        $region36: #{tpu_custom_call.1} parent=11 // pred_fallthru
          _
      $region12: #{tpu_custom_call.1} parent=5 // pred_fallthru
        _
      %p311 = scmp.lt.s32.totalorder %s18, 8
      // Predicated region
      $region37: #{tpu_custom_call.1} parent=5 // pred_check
        %p312 = pneg %p311
      $region38: #{tpu_custom_call.1} parent=5 // pred_check_branch
        %314 = sbr.rel (%p312) target = $region40
      $region39: #{tpu_custom_call.1} parent=5 // pred_region
        // Predicated region
        $region41: #{tpu_custom_call.1} parent=39 // pred_check
          %p315 = pneg %p52
        $region42: #{tpu_custom_call.1} parent=39 // pred_check_branch
          %317 = sbr.rel (%p315) target = $region44
        $region43: #{tpu_custom_call.1} parent=39 // pred_region
          %s318 = smul.u32 4, %s26
          %s319 = ssub.s32 18, %s318
          %p320 = scmp.lt.s32.totalorder %s319, 4
          %s321 = scalar_select %p320, %s319, 4
          %s322 = smul.u32 128, %s321
          %s323 = smul.u32 %s322, 3
          %p324 = scmp.lt.s32.totalorder %s25, 1
          %s325 = scalar_select %p324, %s25, 1
          %p326 = scmp.lt.s32.totalorder %s318, 17
          %s327 = scalar_select %p326, %s318, 17
          %s328 = smul.addr %s327, 3
          %s329 = smul.addr %s325, 54
          %s330 = sadd.s32 %s328, %s329
          %s331 = smul.addr %s330, 8
          %s332 = scalar_lea.vmem %s0, %s331
          %s333 = smul.u32 4, %s26
          %s334 = ssub.s32 18, %s333
          %p335 = scmp.lt.s32.totalorder %s334, 4
          %s336 = scalar_select %p335, %s334, 4
          %s337 = smul.u32 128, %s336
          %s338 = smul.u32 %s337, 3
        $region44: #{tpu_custom_call.1} parent=39 // pred_fallthru
          _
        // Predicated region
        $region45: #{tpu_custom_call.1} parent=39 // pred_check
          %p339 = pneg %p84
        $region46: #{tpu_custom_call.1} parent=39 // pred_check_branch
          %341 = sbr.rel (%p339) target = $region48
        $region47: #{tpu_custom_call.1} parent=39 // pred_region
          %s342 = sadd.s32 %s26, 1
          %s343 = smul.u32 %s342, 4
          %p344 = scmp.lt.s32.totalorder %s25, 1
          %s345 = scalar_select %p344, %s25, 1
          %p346 = scmp.lt.s32.totalorder %s343, 17
          %s347 = scalar_select %p346, %s343, 17
          %s348 = smul.addr %s347, 3
          %s349 = smul.addr %s345, 54
          %s350 = sadd.s32 %s348, %s349
          %s351 = smul.addr %s350, 8
          %s352 = scalar_lea.vmem %s1, %s351
          %s353 = sadd.s32 %s26, 1
          %s354 = smul.u32 %s353, 4
        $region48: #{tpu_custom_call.1} parent=39 // pred_fallthru
          _
        // Predicated region
        $region49: #{tpu_custom_call.1} parent=39 // pred_check
          %p355 = pneg %p118
        $region50: #{tpu_custom_call.1} parent=39 // pred_check_branch
          %357 = sbr.rel (%p355) target = $region52
        $region51: #{tpu_custom_call.1} parent=39 // pred_region
          %s358 = sadd.s32 %s26, 1
          %s359 = smul.u32 %s358, 4
          %s360 = sadd.s32 %s359, 1
          %p361 = scmp.lt.s32.totalorder %s25, 1
          %s362 = scalar_select %p361, %s25, 1
          %p363 = scmp.lt.s32.totalorder %s360, 17
          %s364 = scalar_select %p363, %s360, 17
          %s365 = smul.addr %s364, 3
          %s366 = smul.addr %s362, 54
          %s367 = sadd.s32 %s365, %s366
          %s368 = smul.addr %s367, 8
          %s369 = scalar_lea.vmem %s2, %s368
          %s370 = sadd.s32 %s26, 1
          %s371 = smul.u32 %s370, 4
          %s372 = sadd.s32 %s371, 1
        $region52: #{tpu_custom_call.1} parent=39 // pred_fallthru
          _
      $region40: #{tpu_custom_call.1} parent=5 // pred_fallthru
        _
      %p373 = scmp.le.s32.totalorder 1, %s18
      %p374 = scmp.lt.s32.totalorder %s18, 9
      %p375 = pnand %p373, %p374
      %p376 = pneg %p375
      // Predicated region
      $region53: #{tpu_custom_call.1} parent=5 // pred_check
        _
      $region54: #{tpu_custom_call.1} parent=5 // pred_check_branch
        %378 = sbr.rel (%p375) target = $region56
      $region55: #{tpu_custom_call.1} parent=5 // pred_region
        %s379 = ssub.s32 %s18, 1
        %s380 = smul.u32 4, %s28
        %s381 = ssub.s32 18, %s380
        %p382 = scmp.lt.s32.totalorder %s381, 4
        %s383 = scalar_select %p382, %s381, 4
        %s384 = smul.u32 128, %s383
        %s385 = smul.u32 %s384, 3
        %p386 = scmp.lt.s32.totalorder %s27, 1
        %s387 = scalar_select %p386, %s27, 1
        %p388 = scmp.lt.s32.totalorder %s380, 17
        %s389 = scalar_select %p388, %s380, 17
        %s390 = smul.addr %s389, 3
        %s391 = smul.addr %s387, 54
        %s392 = sadd.s32 %s390, %s391
        %s393 = smul.addr %s392, 8
        %s394 = scalar_lea.vmem %s0, %s393
        %p395 = pneg %p58
        %p396 = pneg %p55
        %s397 = sadd.s32 %s28, 1
        %s398 = smul.u32 %s397, 4
        %p399 = scmp.lt.s32.totalorder %s27, 1
        %s400 = scalar_select %p399, %s27, 1
        %p401 = scmp.lt.s32.totalorder %s398, 17
        %s402 = scalar_select %p401, %s398, 17
        %s403 = smul.addr %s402, 3
        %s404 = smul.addr %s400, 54
        %s405 = sadd.s32 %s403, %s404
        %s406 = smul.addr %s405, 8
        %s407 = scalar_lea.vmem %s1, %s406
        %p408 = pneg %p90
        %p409 = pneg %p87
        %s410 = sadd.s32 %s28, 1
        %s411 = smul.u32 %s410, 4
        %s412 = sadd.s32 %s411, 1
        %p413 = scmp.lt.s32.totalorder %s27, 1
        %s414 = scalar_select %p413, %s27, 1
        %p415 = scmp.lt.s32.totalorder %s412, 17
        %s416 = scalar_select %p415, %s412, 17
        %s417 = smul.addr %s416, 3
        %s418 = smul.addr %s414, 54
        %s419 = sadd.s32 %s417, %s418
        %s420 = smul.addr %s419, 8
        %s421 = scalar_lea.vmem %s2, %s420
        %p422 = pneg %p124
        %p423 = pneg %p121
        %p424 = pneg %p145
        %p425 = pneg %p142
        %p426 = pneg %p166
        %p427 = pneg %p163
        %p428 = pneg %p187
        %p429 = pneg %p184
        %p430 = pneg %p208
        %p431 = pneg %p205
        %p432 = pneg %p229
        %p433 = pneg %p226
        %p434 = pneg %p250
        %p435 = pneg %p247
        %p436 = pneg %p278
        %p437 = pneg %p275
        %s438 = sand.u32 %s265, 1
        %s439 = scalar_lea.sflag [#allocation3], %s438
        %s440 = sand.u32 %s265, 1
        %s441 = smul.addr %s440, 64
        %s442 = scalar_lea.vmem [#allocation2], %s441
        %s443 = smul.u32 4, %s28
        %s444 = ssub.s32 18, %s443
        %p445 = scmp.lt.s32.totalorder %s444, 4
        %s446 = scalar_select %p445, %s444, 4
        %s447 = smul.u32 128, %s446
        %s448 = smul.u32 %s447, 3
        %p449 = scmp.lt.s32.totalorder %s27, 1
        %s450 = scalar_select %p449, %s27, 1
        %p451 = scmp.lt.s32.totalorder %s443, 17
        %s452 = scalar_select %p451, %s443, 17
        %s453 = smul.addr %s452, 3
        %s454 = smul.addr %s450, 54
        %s455 = sadd.s32 %s453, %s454
        %s456 = smul.addr %s455, 8
        %s457 = scalar_lea.vmem %s0, %s456
        %s458 = smul.u32 4, %s28
        %s459 = ssub.s32 18, %s458
        %p460 = scmp.lt.s32.totalorder %s459, 4
        %s461 = scalar_select %p460, %s459, 4
        %s462 = smul.u32 128, %s461
        %s463 = smul.u32 %s462, 3
        %s464 = sadd.s32 %s28, 1
        %s465 = smul.u32 %s464, 4
        %p466 = scmp.lt.s32.totalorder %s27, 1
        %s467 = scalar_select %p466, %s27, 1
        %p468 = scmp.lt.s32.totalorder %s465, 17
        %s469 = scalar_select %p468, %s465, 17
        %s470 = smul.addr %s469, 3
        %s471 = smul.addr %s467, 54
        %s472 = sadd.s32 %s470, %s471
        %s473 = smul.addr %s472, 8
        %s474 = scalar_lea.vmem %s1, %s473
        %s475 = sadd.s32 %s28, 1
        %s476 = smul.u32 %s475, 4
        %s477 = sadd.s32 %s28, 1
        %s478 = smul.u32 %s477, 4
        %s479 = sadd.s32 %s478, 1
        %p480 = scmp.lt.s32.totalorder %s27, 1
        %s481 = scalar_select %p480, %s27, 1
        %p482 = scmp.lt.s32.totalorder %s479, 17
        %s483 = scalar_select %p482, %s479, 17
        %s484 = smul.addr %s483, 3
        %s485 = smul.addr %s481, 54
        %s486 = sadd.s32 %s484, %s485
        %s487 = smul.addr %s486, 8
        %s488 = scalar_lea.vmem %s2, %s487
        %s489 = sadd.s32 %s28, 1
        %s490 = smul.u32 %s489, 4
        %s491 = sadd.s32 %s490, 1
        %s492 = smul.u32 4, %s28
        %v494 = vld [vmem:[%s457] sm:$0xff]
        %v495 = vld [vmem:[%s457 + $0x8] sm:$0xff]
        %v496 = vld [vmem:[%s457 + $0x10] sm:$0xff]
        %v497 = vld [vmem:[%s457 + $0x18] sm:$0xff]
        %v498 = vld [vmem:[%s457 + $0x20] sm:$0xff]
        %v499 = vld [vmem:[%s457 + $0x28] sm:$0xff]
        %v500 = vld [vmem:[%s457 + $0x30] sm:$0xff]
        %v501 = vld [vmem:[%s457 + $0x38] sm:$0xff]
        %v502 = vld [vmem:[%s457 + $0x40] sm:$0xff]
        %v503 = vld [vmem:[%s457 + $0x48] sm:$0xff]
        %v504 = vld [vmem:[%s457 + $0x50] sm:$0xff]
        %v505 = vld [vmem:[%s457 + $0x58] sm:$0xff]
        %v506 = vld [vmem:[%s474] sm:$0xff]
        %v507 = vld [vmem:[%s474 + $0x8] sm:$0xff]
        %v508 = vld [vmem:[%s474 + $0x10] sm:$0xff]
        %v509 = vld [vmem:[%s488] sm:$0xff]
        %v510 = vld [vmem:[%s488 + $0x8] sm:$0xff]
        %v511 = vld [vmem:[%s488 + $0x10] sm:$0xff]
        %v512 = vld [vmem:[%s3] sm:$0x1]
        %v513 = vlaneseq
        %v514 = vshrl.u32 %v513, 7
        %v515 = vsub.s32 0, %v514
        %v516 = vrot.slane %v512, %v515
        %v517 = vmul.f32 %v494, %v516
        %v518 = vmul.f32 %v495, %v516
        %v519 = vmul.f32 %v497, %v516
        %v520 = vmul.f32 %v498, %v516
        %v521 = vmul.f32 %v500, %v516
        %v522 = vmul.f32 %v501, %v516
        %v523 = vmul.f32 %v503, %v516
        %v524 = vmul.f32 %v504, %v516
        %v525 = vadd.f32 %v517, 0.0
        %v526 = vadd.f32 %v518, 0.0
        %v527 = vadd.f32 %v519, 0.0
        %v528 = vadd.f32 %v520, 0.0
        %v529 = vadd.f32 %v521, 0.0
        %v530 = vadd.f32 %v522, 0.0
        %v531 = vadd.f32 %v523, 0.0
        %v532 = vadd.f32 %v524, 0.0
        %v533 = vld [vmem:[%s3 + $0x1] sm:$0x1]
        %v534 = vlaneseq
        %v535 = vshrl.u32 %v534, 7
        %v536 = vsub.s32 0, %v535
        %v537 = vrot.slane %v533, %v536
        %v538 = vmul.f32 %v494, %v537
        %v539 = vmul.f32 %v495, %v537
        %v540 = vmul.f32 %v496, %v537
        %v541 = vmul.f32 %v497, %v537
        %v542 = vmul.f32 %v498, %v537
        %v543 = vmul.f32 %v499, %v537
        %v544 = vmul.f32 %v500, %v537
        %v545 = vmul.f32 %v501, %v537
        %v546 = vmul.f32 %v502, %v537
        %v547 = vmul.f32 %v503, %v537
        %v548 = vmul.f32 %v504, %v537
        %v549 = vmul.f32 %v505, %v537
        %v550 = vadd.f32 %v538, 0.0
        %v551 = vadd.f32 %v539, 0.0
        %v552 = vadd.f32 %v540, 0.0
        %v553 = vadd.f32 %v541, 0.0
        %v554 = vadd.f32 %v542, 0.0
        %v555 = vadd.f32 %v543, 0.0
        %v556 = vadd.f32 %v544, 0.0
        %v557 = vadd.f32 %v545, 0.0
        %v558 = vadd.f32 %v546, 0.0
        %v559 = vadd.f32 %v547, 0.0
        %v560 = vadd.f32 %v548, 0.0
        %v561 = vadd.f32 %v549, 0.0
        %v562 = vld [vmem:[%s3 + $0x2] sm:$0x1]
        %v563 = vlaneseq
        %v564 = vshrl.u32 %v563, 7
        %v565 = vsub.s32 0, %v564
        %v566 = vrot.slane %v562, %v565
        %v567 = vmul.f32 %v494, %v566
        %v568 = vmul.f32 %v495, %v566
        %v569 = vmul.f32 %v496, %v566
        %v570 = vmul.f32 %v497, %v566
        %v571 = vmul.f32 %v498, %v566
        %v572 = vmul.f32 %v499, %v566
        %v573 = vmul.f32 %v500, %v566
        %v574 = vmul.f32 %v501, %v566
        %v575 = vmul.f32 %v502, %v566
        %v576 = vmul.f32 %v503, %v566
        %v577 = vmul.f32 %v504, %v566
        %v578 = vmul.f32 %v505, %v566
        %v579 = vadd.f32 %v567, 0.0
        %v580 = vadd.f32 %v568, 0.0
        %v581 = vadd.f32 %v569, 0.0
        %v582 = vadd.f32 %v570, 0.0
        %v583 = vadd.f32 %v571, 0.0
        %v584 = vadd.f32 %v572, 0.0
        %v585 = vadd.f32 %v573, 0.0
        %v586 = vadd.f32 %v574, 0.0
        %v587 = vadd.f32 %v575, 0.0
        %v588 = vadd.f32 %v576, 0.0
        %v589 = vadd.f32 %v577, 0.0
        %v590 = vadd.f32 %v578, 0.0
        %v591 = vld [vmem:[%s3 + $0x3] sm:$0x1]
        %v592 = vlaneseq
        %v593 = vshrl.u32 %v592, 7
        %v594 = vsub.s32 0, %v593
        %v595 = vrot.slane %v591, %v594
        %v596 = vmul.f32 %v497, %v595
        %v597 = vmul.f32 %v498, %v595
        %v598 = vmul.f32 %v500, %v595
        %v599 = vmul.f32 %v501, %v595
        %v600 = vmul.f32 %v503, %v595
        %v601 = vmul.f32 %v504, %v595
        %v602 = vmul.f32 %v506, %v595
        %v603 = vmul.f32 %v507, %v595
        %v604 = vadd.f32 %v525, %v596
        %v605 = vadd.f32 %v526, %v597
        %v606 = vadd.f32 %v527, %v598
        %v607 = vadd.f32 %v528, %v599
        %v608 = vadd.f32 %v529, %v600
        %v609 = vadd.f32 %v530, %v601
        %v610 = vadd.f32 %v531, %v602
        %v611 = vadd.f32 %v532, %v603
        %v612 = vld [vmem:[%s3 + $0x4] sm:$0x1]
        %v613 = vlaneseq
        %v614 = vshrl.u32 %v613, 7
        %v615 = vsub.s32 0, %v614
        %v616 = vrot.slane %v612, %v615
        %v617 = vmul.f32 %v497, %v616
        %v618 = vmul.f32 %v498, %v616
        %v619 = vmul.f32 %v499, %v616
        %v620 = vmul.f32 %v500, %v616
        %v621 = vmul.f32 %v501, %v616
        %v622 = vmul.f32 %v502, %v616
        %v623 = vmul.f32 %v503, %v616
        %v624 = vmul.f32 %v504, %v616
        %v625 = vmul.f32 %v505, %v616
        %v626 = vmul.f32 %v506, %v616
        %v627 = vmul.f32 %v507, %v616
        %v628 = vmul.f32 %v508, %v616
        %v629 = vadd.f32 %v550, %v617
        %v630 = vadd.f32 %v551, %v618
        %v631 = vadd.f32 %v552, %v619
        %v632 = vadd.f32 %v553, %v620
        %v633 = vadd.f32 %v554, %v621
        %v634 = vadd.f32 %v555, %v622
        %v635 = vadd.f32 %v556, %v623
        %v636 = vadd.f32 %v557, %v624
        %v637 = vadd.f32 %v558, %v625
        %v638 = vadd.f32 %v559, %v626
        %v639 = vadd.f32 %v560, %v627
        %v640 = vadd.f32 %v561, %v628
        %v641 = vld [vmem:[%s3 + $0x5] sm:$0x1]
        %v642 = vlaneseq
        %v643 = vshrl.u32 %v642, 7
        %v644 = vsub.s32 0, %v643
        %v645 = vrot.slane %v641, %v644
        %v646 = vmul.f32 %v497, %v645
        %v647 = vmul.f32 %v498, %v645
        %v648 = vmul.f32 %v499, %v645
        %v649 = vmul.f32 %v500, %v645
        %v650 = vmul.f32 %v501, %v645
        %v651 = vmul.f32 %v502, %v645
        %v652 = vmul.f32 %v503, %v645
        %v653 = vmul.f32 %v504, %v645
        %v654 = vmul.f32 %v505, %v645
        %v655 = vmul.f32 %v506, %v645
        %v656 = vmul.f32 %v507, %v645
        %v657 = vmul.f32 %v508, %v645
        %v658 = vadd.f32 %v579, %v646
        %v659 = vadd.f32 %v580, %v647
        %v660 = vadd.f32 %v581, %v648
        %v661 = vadd.f32 %v582, %v649
        %v662 = vadd.f32 %v583, %v650
        %v663 = vadd.f32 %v584, %v651
        %v664 = vadd.f32 %v585, %v652
        %v665 = vadd.f32 %v586, %v653
        %v666 = vadd.f32 %v587, %v654
        %v667 = vadd.f32 %v588, %v655
        %v668 = vadd.f32 %v589, %v656
        %v669 = vadd.f32 %v590, %v657
        %v670 = vld [vmem:[%s3 + $0x6] sm:$0x1]
        %v671 = vlaneseq
        %v672 = vshrl.u32 %v671, 7
        %v673 = vsub.s32 0, %v672
        %v674 = vrot.slane %v670, %v673
        %v675 = vmul.f32 %v500, %v674
        %v676 = vmul.f32 %v501, %v674
        %v677 = vmul.f32 %v503, %v674
        %v678 = vmul.f32 %v504, %v674
        %v679 = vmul.f32 %v506, %v674
        %v680 = vmul.f32 %v507, %v674
        %v681 = vmul.f32 %v509, %v674
        %v682 = vmul.f32 %v510, %v674
        %v683 = vadd.f32 %v604, %v675
        %v684 = vadd.f32 %v605, %v676
        %v685 = vadd.f32 %v606, %v677
        %v686 = vadd.f32 %v607, %v678
        %v687 = vadd.f32 %v608, %v679
        %v688 = vadd.f32 %v609, %v680
        %v689 = vadd.f32 %v610, %v681
        %v690 = vadd.f32 %v611, %v682
        %v691 = vld [vmem:[%s3 + $0x7] sm:$0x1]
        %v692 = vlaneseq
        %v693 = vshrl.u32 %v692, 7
        %v694 = vsub.s32 0, %v693
        %v695 = vrot.slane %v691, %v694
        %v696 = vmul.f32 %v500, %v695
        %v697 = vmul.f32 %v501, %v695
        %v698 = vmul.f32 %v502, %v695
        %v699 = vmul.f32 %v503, %v695
        %v700 = vmul.f32 %v504, %v695
        %v701 = vmul.f32 %v505, %v695
        %v702 = vmul.f32 %v506, %v695
        %v703 = vmul.f32 %v507, %v695
        %v704 = vmul.f32 %v508, %v695
        %v705 = vmul.f32 %v509, %v695
        %v706 = vmul.f32 %v510, %v695
        %v707 = vmul.f32 %v511, %v695
        %v708 = vadd.f32 %v629, %v696
        %v709 = vadd.f32 %v630, %v697
        %v710 = vadd.f32 %v631, %v698
        %v711 = vadd.f32 %v632, %v699
        %v712 = vadd.f32 %v633, %v700
        %v713 = vadd.f32 %v634, %v701
        %v714 = vadd.f32 %v635, %v702
        %v715 = vadd.f32 %v636, %v703
        %v716 = vadd.f32 %v637, %v704
        %v717 = vadd.f32 %v638, %v705
        %v718 = vadd.f32 %v639, %v706
        %v719 = vadd.f32 %v640, %v707
        %v720 = vld [vmem:[%s3 + $0x8] sm:$0x1]
        %v721 = vlaneseq
        %v722 = vshrl.u32 %v721, 7
        %v723 = vsub.s32 0, %v722
        %v724 = vrot.slane %v720, %v723
        %v725 = vmul.f32 %v500, %v724
        %v726 = vmul.f32 %v501, %v724
        %v727 = vmul.f32 %v502, %v724
        %v728 = vmul.f32 %v503, %v724
        %v729 = vmul.f32 %v504, %v724
        %v730 = vmul.f32 %v505, %v724
        %v731 = vmul.f32 %v506, %v724
        %v732 = vmul.f32 %v507, %v724
        %v733 = vmul.f32 %v508, %v724
        %v734 = vmul.f32 %v509, %v724
        %v735 = vmul.f32 %v510, %v724
        %v736 = vmul.f32 %v511, %v724
        %v737 = vadd.f32 %v658, %v725
        %v738 = vadd.f32 %v659, %v726
        %v739 = vadd.f32 %v660, %v727
        %v740 = vadd.f32 %v661, %v728
        %v741 = vadd.f32 %v662, %v729
        %v742 = vadd.f32 %v663, %v730
        %v743 = vadd.f32 %v664, %v731
        %v744 = vadd.f32 %v665, %v732
        %v745 = vadd.f32 %v666, %v733
        %v746 = vadd.f32 %v667, %v734
        %v747 = vadd.f32 %v668, %v735
        %v748 = vadd.f32 %v669, %v736
        %vm761 = vcmask 1046528
        %v762 = vrot.slane %v708, 1
        %v763 = vrot.slane %v709, 1
        %v764 = vsel %vm761, %v762, %v763
        %v765 = vrot.slane %v710, 1
        %v766 = vsel %vm761, %v763, %v765
        %v767 = vrot.slane %v711, 1
        %v768 = vrot.slane %v712, 1
        %v769 = vsel %vm761, %v767, %v768
        %v770 = vrot.slane %v713, 1
        %v771 = vsel %vm761, %v768, %v770
        %v772 = vrot.slane %v714, 1
        %v773 = vrot.slane %v715, 1
        %v774 = vsel %vm761, %v772, %v773
        %v775 = vrot.slane %v716, 1
        %v776 = vsel %vm761, %v773, %v775
        %v777 = vrot.slane %v717, 1
        %v778 = vrot.slane %v718, 1
        %v779 = vsel %vm761, %v777, %v778
        %v780 = vrot.slane %v719, 1
        %v781 = vsel %vm761, %v778, %v780
        %v790 = vadd.f32 %v683, %v764
        %v791 = vadd.f32 %v684, %v766
        %v792 = vadd.f32 %v685, %v769
        %v793 = vadd.f32 %v686, %v771
        %v794 = vadd.f32 %v687, %v774
        %v795 = vadd.f32 %v688, %v776
        %v796 = vadd.f32 %v689, %v779
        %v797 = vadd.f32 %v690, %v781
        %vm810 = vcmask 1045504
        %v811 = vrot.slane %v737, 2
        %v812 = vrot.slane %v738, 2
        %v813 = vsel %vm810, %v811, %v812
        %v814 = vrot.slane %v739, 2
        %v815 = vsel %vm810, %v812, %v814
        %v816 = vrot.slane %v740, 2
        %v817 = vrot.slane %v741, 2
        %v818 = vsel %vm810, %v816, %v817
        %v819 = vrot.slane %v742, 2
        %v820 = vsel %vm810, %v817, %v819
        %v821 = vrot.slane %v743, 2
        %v822 = vrot.slane %v744, 2
        %v823 = vsel %vm810, %v821, %v822
        %v824 = vrot.slane %v745, 2
        %v825 = vsel %vm810, %v822, %v824
        %v826 = vrot.slane %v746, 2
        %v827 = vrot.slane %v747, 2
        %v828 = vsel %vm810, %v826, %v827
        %v829 = vrot.slane %v748, 2
        %v830 = vsel %vm810, %v827, %v829
        %v839 = vadd.f32 %v790, %v813
        %v840 = vadd.f32 %v791, %v815
        %v841 = vadd.f32 %v792, %v818
        %v842 = vadd.f32 %v793, %v820
        %v843 = vadd.f32 %v794, %v823
        %v844 = vadd.f32 %v795, %v825
        %v845 = vadd.f32 %v796, %v828
        %v846 = vadd.f32 %v797, %v830
        %v847 = vld [vmem:[%s4] sm:$0x1]
        %v849 = vlaneseq
        %v850 = vshrl.u32 %v849, 7
        %v851 = vsub.s32 0, %v850
        %v852 = vrot.slane %v847, %v851
        %v854 = vmul.f32 %v839, %v852
        %v855 = vmul.f32 %v840, %v852
        %v856 = vmul.f32 %v841, %v852
        %v857 = vmul.f32 %v842, %v852
        %v858 = vmul.f32 %v843, %v852
        %v859 = vmul.f32 %v844, %v852
        %v860 = vmul.f32 %v845, %v852
        %v861 = vmul.f32 %v846, %v852
        %v862 = vld [vmem:[%s5] sm:$0x1]
        %v864 = vlaneseq
        %v865 = vshrl.u32 %v864, 7
        %v866 = vsub.s32 0, %v865
        %v867 = vrot.slane %v862, %v866
        %v869 = vadd.f32 %v854, %v867
        %v870 = vadd.f32 %v855, %v867
        %v871 = vadd.f32 %v856, %v867
        %v872 = vadd.f32 %v857, %v867
        %v873 = vadd.f32 %v858, %v867
        %v874 = vadd.f32 %v859, %v867
        %v875 = vadd.f32 %v860, %v867
        %v876 = vadd.f32 %v861, %v867
        %v877 = vmax.f32 %v869, 0.0
        %v878 = vmax.f32 %v870, 0.0
        %v879 = vmax.f32 %v871, 0.0
        %v880 = vmax.f32 %v872, 0.0
        %v881 = vmax.f32 %v873, 0.0
        %v882 = vmax.f32 %v874, 0.0
        %v883 = vmax.f32 %v875, 0.0
        %v884 = vmax.f32 %v876, 0.0
        %v885 = vpack.c.bf16 %v878, %v877
        %v886 = vpack.c.bf16 %v880, %v879
        %v887 = vpack.c.bf16 %v882, %v881
        %v888 = vpack.c.bf16 %v884, %v883
        %v889 = vld [vmem:[%s6] sm:$0xf]
        %vm890 = vcmask 64512
        %v892 = vsel %vm890, %v885, 0
        %v895 = vsel %vm890, %v886, 0
        %v898 = vsel %vm890, %v887, 0
        %v901 = vsel %vm890, %v888, 0
        %vm903 = vcmask 1043456
        %v905 = vsel %vm903, %v889, 0
        %907 = vmatprep.subr.bf16.mxu0 0
        %908 = vmatpush1.bf16.msra.mxu0 %v905
        %909 = vmatprep.subr.bf16.mxu0 0
        %910 = vmatpush1.bf16.msra.mxu0 0
        %911 = vmatprep.subr.bf16.mxu0 0
        %912 = vmatpush1.bf16.msra.mxu0 0
        %913 = vmatprep.subr.bf16.mxu0 0
        %914 = vmatpush1.bf16.msra.mxu0 0
        %915 = vmatprep.subr.bf16.mxu0 0
        %916 = vmatpush1.bf16.msra.mxu0 0
        %917 = vmatprep.subr.bf16.mxu0 0
        %918 = vmatpush1.bf16.msra.mxu0 0
        %919 = vmatprep.subr.bf16.mxu0 0
        %920 = vmatpush1.bf16.msra.mxu0 0
        %921 = vmatprep.subr.bf16.mxu0 0
        %922 = vmatpush1.bf16.msra.mxu0 0
        %923 = vmatprep.subr.bf16.mxu0 0
        %924 = vmatpush1.bf16.msra.mxu0 0
        %925 = vmatprep.subr.bf16.mxu0 0
        %926 = vmatpush1.bf16.msra.mxu0 0
        %927 = vmatprep.subr.bf16.mxu0 0
        %928 = vmatpush1.bf16.msra.mxu0 0
        %929 = vmatprep.subr.bf16.mxu0 0
        %930 = vmatpush1.bf16.msra.mxu0 0
        %931 = vmatprep.subr.bf16.mxu0 0
        %932 = vmatpush1.bf16.msra.mxu0 0
        %933 = vmatprep.subr.bf16.mxu0 0
        %934 = vmatpush1.bf16.msra.mxu0 0
        %935 = vmatprep.subr.bf16.mxu0 0
        %936 = vmatpush1.bf16.msra.mxu0 0
        %937 = vmatprep.subr.bf16.mxu0 0
        %938 = vmatpush1.bf16.msra.mxu0 0
        %939 = vmatprep.mubr.bf16.mxu0 0
        %940 = vmatmul.mubr.bf16.gmra.mrb[0].mxu0 %v892
        %v941 = vpop.f32.mrb[0].mxu0
        %v942 = vadd.f32 0.0, %v941
        %v943 = vpop.f32.mrb[0].mxu0
        %v944 = vpop.f32.mrb[0].mxu0
        %v945 = vadd.f32 0.0, %v944
        %v946 = vpop.f32.mrb[0].mxu0
        %947 = vmatprep.mubr.bf16.mxu0 0
        %948 = vmatmul.mubr.bf16.gmra.mrb[0].mxu0 %v895
        %v949 = vpop.f32.mrb[0].mxu0
        %v950 = vadd.f32 0.0, %v949
        %v951 = vpop.f32.mrb[0].mxu0
        %v952 = vpop.f32.mrb[0].mxu0
        %v953 = vadd.f32 0.0, %v952
        %v954 = vpop.f32.mrb[0].mxu0
        %955 = vmatprep.mubr.bf16.mxu0 0
        %956 = vmatmul.mubr.bf16.gmra.mrb[0].mxu0 %v898
        %v957 = vpop.f32.mrb[0].mxu0
        %v958 = vadd.f32 0.0, %v957
        %v959 = vpop.f32.mrb[0].mxu0
        %v960 = vpop.f32.mrb[0].mxu0
        %v961 = vadd.f32 0.0, %v960
        %v962 = vpop.f32.mrb[0].mxu0
        %963 = vmatprep.mubr.bf16.mxu0 0
        %964 = vmatmul.mubr.bf16.gmra.mrb[0].mxu0 %v901
        %v965 = vpop.f32.mrb[0].mxu0
        %v966 = vadd.f32 0.0, %v965
        %v967 = vpop.f32.mrb[0].mxu0
        %v968 = vpop.f32.mrb[0].mxu0
        %v969 = vadd.f32 0.0, %v968
        %v970 = vpop.f32.mrb[0].mxu0
        %971 = vdwg.mxu0
        %v972 = vld [vmem:[%s7] sm:$0x1]
        %v974 = vlaneseq
        %v975 = vshrl.u32 %v974, 7
        %v976 = vsub.s32 0, %v975
        %v977 = vrot.slane %v972, %v976
        %v979 = vmul.f32 %v942, %v977
        %v980 = vmul.f32 %v945, %v977
        %v981 = vmul.f32 %v950, %v977
        %v982 = vmul.f32 %v953, %v977
        %v983 = vmul.f32 %v958, %v977
        %v984 = vmul.f32 %v961, %v977
        %v985 = vmul.f32 %v966, %v977
        %v986 = vmul.f32 %v969, %v977
        %v987 = vld [vmem:[%s8] sm:$0x1]
        %v989 = vlaneseq
        %v990 = vshrl.u32 %v989, 7
        %v991 = vsub.s32 0, %v990
        %v992 = vrot.slane %v987, %v991
        %v994 = vadd.f32 %v979, %v992
        %v995 = vadd.f32 %v980, %v992
        %v996 = vadd.f32 %v981, %v992
        %v997 = vadd.f32 %v982, %v992
        %v998 = vadd.f32 %v983, %v992
        %v999 = vadd.f32 %v984, %v992
        %v1000 = vadd.f32 %v985, %v992
        %v1001 = vadd.f32 %v986, %v992
        %v1002 = vmax.f32 %v994, 0.0
        %v1003 = vmax.f32 %v995, 0.0
        %v1004 = vmax.f32 %v996, 0.0
        %v1005 = vmax.f32 %v997, 0.0
        %v1006 = vmax.f32 %v998, 0.0
        %v1007 = vmax.f32 %v999, 0.0
        %v1008 = vmax.f32 %v1000, 0.0
        %v1009 = vmax.f32 %v1001, 0.0
        %vm1010 = vcmask 130048
        %1011 = vst.msk [vmem:[%s442] sm:$0xff] %vm1010, %v1002
        %1012 = vst.msk [vmem:[%s442 + $0x8] sm:$0xff] %vm1010, %v1003
        %1013 = vst.msk [vmem:[%s442 + $0x10] sm:$0xff] %vm1010, %v1004
        %1014 = vst.msk [vmem:[%s442 + $0x18] sm:$0xff] %vm1010, %v1005
        %1015 = vst.msk [vmem:[%s442 + $0x20] sm:$0xff] %vm1010, %v1006
        %1016 = vst.msk [vmem:[%s442 + $0x28] sm:$0xff] %vm1010, %v1007
        %1017 = vst.msk [vmem:[%s442 + $0x30] sm:$0xff] %vm1010, %v1008
        %1018 = vst.msk [vmem:[%s442 + $0x38] sm:$0xff] %vm1010, %v1009
        %s1019 = sand.u32 %s265, 1
        %s1020 = scalar_lea.sflag [#allocation3], %s1019
        %s1021 = sand.u32 %s265, 1
        %s1022 = smul.addr %s1021, 64
        %s1023 = scalar_lea.vmem [#allocation2], %s1022
        // Predicated region
        $region57: #{tpu_custom_call.1} parent=55 // pred_check
          %p1024 = pneg %p275
        $region58: #{tpu_custom_call.1} parent=55 // pred_check_branch
          %1026 = sbr.rel (%p1024) target = $region60
        $region59: #{tpu_custom_call.1} parent=55 // pred_region
          %s1027 = smul.u32 4, %s28
          %s1029 = ssub.s32 1024, 1024
          %1030 = vsyncadd %s1020, %s1029
          %s1031 = smul.addr %s1027, 2
          %s1032 = smul.addr %s27, 32
          %s1033 = sadd.s32 %s1031, %s1032
          %s1034 = smul.addr %s1033, 128
          %s1035 = scalar_lea.hbm %s9, %s1034
          %s1036 = sshll.u32 %s1023, 4
          %s1037 = int_to_ptr.vmem [resolvable:$true] %s1036
          %1042 = dma.vmem_to_hbm [thread:$0]  %s1037, 1024, %s1035, %s1020, 128, 128, 8
        $region60: #{tpu_custom_call.1} parent=55 // pred_fallthru
          _
      $region56: #{tpu_custom_call.1} parent=5 // pred_fallthru
        _
      %p1043 = scmp.le.s32.totalorder 2, %s18
      // Predicated region
      $region61: #{tpu_custom_call.1} parent=5 // pred_check
        %p1044 = pneg %p1043
      $region62: #{tpu_custom_call.1} parent=5 // pred_check_branch
        %1046 = sbr.rel (%p1044) target = $region64
      $region63: #{tpu_custom_call.1} parent=5 // pred_region
        %s1047 = ssub.s32 %s18, 2
        // Predicated region
        $region65: #{tpu_custom_call.1} parent=63 // pred_check
          %p1048 = pneg %p281
        $region66: #{tpu_custom_call.1} parent=63 // pred_check_branch
          %1050 = sbr.rel (%p1048) target = $region68
        $region67: #{tpu_custom_call.1} parent=63 // pred_region
          %s1051 = sand.u32 %s266, 1
          %s1052 = scalar_lea.sflag [#allocation3], %s1051
          %s1053 = sand.u32 %s266, 1
          %s1054 = smul.addr %s1053, 64
          %s1055 = scalar_lea.vmem [#allocation2], %s1054
          %1056 = dma.done %s1052, 1024
        $region68: #{tpu_custom_call.1} parent=63 // pred_fallthru
          _
      $region64: #{tpu_custom_call.1} parent=5 // pred_fallthru
        _
    $region6: #{tpu_custom_call.1} parent=1 // loop_footer
      %s22 = sadd.s32 1, %s18
    $region7: #{tpu_custom_call.1} parent=1 // loop_footer_branch
      %17 = sbr.rel target = $region3
    $region8: #{tpu_custom_call.1} parent=1 // loop_exit
      _
    %1057 = vsyncpa [#allocation3], 1
    %s1058 = scalar_lea.sflag [#allocation3], 1
    %1059 = vsyncpa %s1058, 1

</llo_original>
